<compile_context>
chip_gen: v5e
topology: v5e:2x2
jax: 0.10.0
libtpu: 0.0.40
codegen_flags: <defaults>
</compile_context>

<pallas_src>
import functools

import jax
import jax.numpy as jnp
from jax import lax
from jax.experimental import pallas as pl
from jax.experimental.pallas import tpu as pltpu


def _round_up(x, m):
    return ((x + m - 1) // m) * m


def _vmem_capacity_bytes():
    try:
        return int(pltpu.get_tpu_info().vmem_capacity_bytes)
    except Exception:
        return 64 * 1024 * 1024  # conservative default (v7x per-TensorCore VMEM)


def logreg_kernel(x_ref, w_ref, b_ref, o_ref, *, use_mxu):
    # x_ref: (tile_b, F) VMEM
    # w_ref: (F, 1) VMEM (MXU path)  or  (1, F) VMEM (VPU path, large F)
    # b_ref: (1, 1) SMEM scalar
    # o_ref: (1, 1, tile_b) VMEM  (lane-dense output block)
    x = x_ref[...]
    b = b_ref[0, 0]
    if use_mxu:
        # MXU is idle otherwise; f32 full precision (op stays memory-bound).
        z = jnp.dot(x, w_ref[...], preferred_element_type=jnp.float32,
                    precision=lax.Precision.HIGHEST)
    else:
        z = jnp.sum(x * w_ref[...], axis=-1, keepdims=True)
    z = z + b                                   # (tile_b, 1) f32
    tile_b = z.shape[0]
    z_row = z.reshape(1, 1, tile_b)             # lane-dense before EUP + store
    o_ref[...] = jax.nn.sigmoid(z_row).astype(o_ref.dtype)


def _choose_tile_b(B, F_pad, itemsize, x_budget_bytes,
                   target_tile_bytes=8 * 1024 * 1024):
    row_bytes = F_pad * itemsize
    # Largest 8-aligned tile whose double-buffered footprint fits the budget.
    budget_rows = max(8, (x_budget_bytes // (2 * row_bytes)) // 8 * 8)
    # Multi-MiB tiles amortize the ~0.35 us per-step overhead (~85% of HBM
    # roofline); no fixed row cap.
    target_rows = max(8, (target_tile_bytes // row_bytes) // 8 * 8)
    tile = min(budget_rows, target_rows)
    b8 = _round_up(B, 8)
    tile = min(tile, b8)
    # Prefer >= 2 grid steps so the "parallel" batch axis can use both v7x TCs.
    if b8 > 8 and b8 <= tile:
        tile = max(8, _round_up((b8 + 1) // 2, 8))
    return tile


def logistic_regression(x, weight, bias):
    """x: (B, F) float32, weight: (1, F), bias: (1,) -> (B, 1) float32."""
    B, F = x.shape
    itemsize = x.dtype.itemsize
    F_pad = _round_up(F, 128)

    # MXU path keeps a lane-padded (F, 1) weight column resident in VMEM;
    # only worthwhile (and affordable) for small / mid F.
    use_mxu = F <= 4096
    if use_mxu:
        w_in = weight.reshape(F, 1)
        w_spec = pl.BlockSpec((F, 1), lambda i: (0, 0))
        w_bytes = 2 * _round_up(F, 8) * 128 * itemsize      # double-buffered
    else:
        w_in = weight
        w_spec = pl.BlockSpec((1, F), lambda i: (0, 0))
        w_bytes = 2 * 8 * F_pad * itemsize                   # double-buffered

    # Generation-aware ceiling (<= 56 MiB on v7x, up to 120 MiB on v5e/v6e).
    vmem_cap = min(_vmem_capacity_bytes(), 128 * 1024 * 1024) - 8 * 1024 * 1024
    vmem_cap = max(vmem_cap, 32 * 1024 * 1024)
    x_budget = max(vmem_cap - w_bytes - 4 * 1024 * 1024, 4 * 1024 * 1024)

    tile_b = _choose_tile_b(B, F_pad, itemsize, x_budget)
    padded_b = _round_up(B, tile_b)
    if padded_b != B:
        x = jnp.pad(x, ((0, padded_b - B), (0, 0)))
    num_tiles = padded_b // tile_b

    # Footprint: x double buffer + weight double buffer + lane-padded output
    # double buffer + Mosaic internal slack.
    out_bytes = 2 * 8 * _round_up(tile_b, 128) * itemsize
    vmem_needed = (2 * tile_b * F_pad * itemsize + w_bytes + out_bytes
                   + 2 * 1024 * 1024)
    vmem_limit = int(min(max(vmem_needed, 32 * 1024 * 1024), vmem_cap))

    b2 = bias.reshape(1, 1)

    out = pl.pallas_call(
        functools.partial(logreg_kernel, use_mxu=use_mxu),
        out_shape=jax.ShapeDtypeStruct((num_tiles, 1, tile_b), x.dtype),
        grid=(num_tiles,),
        in_specs=[
            pl.BlockSpec((tile_b, F), lambda i: (i, 0)),        # x: batch-tiled
            w_spec,                                             # weight: resident
            pl.BlockSpec(memory_space=pltpu.MemorySpace.SMEM),  # bias scalar
        ],
        out_specs=pl.BlockSpec((1, 1, tile_b), lambda i: (i, 0, 0)),
        compiler_params=pltpu.CompilerParams(
            dimension_semantics=("parallel",),
            vmem_limit_bytes=vmem_limit,
        ),
    )(x, w_in, b2)

    return out.reshape(padded_b, 1)[:B]


if __name__ == "__main__":
    # Small deterministic example consistent with the module's forward:
    # LogisticRegression(n_input_features=32) applied to a batch of 8 samples.
    B, F = 8, 32
    key = jax.random.PRNGKey(0)
    kx, kw, kb = jax.random.split(key, 3)

    x = jax.random.normal(kx, (B, F), dtype=jnp.float32)

    # Deterministic parameter init mimicking nn.Linear default:
    # U(-1/sqrt(F), 1/sqrt(F)) for both weight and bias.
    bound = 1.0 / (F ** 0.5)
    weight = jax.random.uniform(kw, (1, F), minval=-bound, maxval=bound,
                                dtype=jnp.float32)
    bias = jax.random.uniform(kb, (1,), minval=-bound, maxval=bound,
                              dtype=jnp.float32)

    y_pred = logistic_regression(x, weight, bias)
    jax.block_until_ready(y_pred)

    # Sanity check against plain-JAX reference (same f32 matmul precision).
    y_ref = jax.nn.sigmoid(
        jnp.dot(x, weight.T, precision=lax.Precision.HIGHEST) + bias)
    assert y_pred.shape == (B, 1)
    assert jnp.allclose(y_pred, y_ref, atol=1e-5, rtol=1e-5), (
        float(jnp.max(jnp.abs(y_pred - y_ref))))

    print("KERNEL_OK")
</pallas_src>

<mosaic_0001>
module attributes {stable_mosaic.version = 11 : i64} {
  func.func @logreg_kernel(%arg0: i32, %arg1: memref<8x32xf32, #tpu.memory_space<vmem>>, %arg2: memref<32x1xf32, #tpu.memory_space<vmem>>, %arg3: memref<1x1xf32, #tpu.memory_space<smem>>, %arg4: memref<1x1x8xf32, #tpu.memory_space<vmem>>) attributes {dimension_semantics = [#tpu.dimension_semantics<parallel>], iteration_bounds = array<i64: 1>, scalar_prefetch = 0 : i64, scratch_operands = 0 : i64, tpu.core_type = #tpu.core_type<tc>, window_params = [{transform_indices = @transform_0, window_bounds = array<i64: 8, 32>}, {pipeline_mode = #tpu.pipeline_mode<synchronous>, transform_indices = @transform_1, window_bounds = array<i64: 32, 1>}, {transform_indices = @transform_2, window_bounds = array<i64: 1, 1>}, {transform_indices = @transform_3, window_bounds = array<i64: 1, 1, 8>}]} {
    %c0 = arith.constant 0 : index
    %c0_0 = arith.constant 0 : index
    %0 = vector.load %arg1[%c0, %c0_0] : memref<8x32xf32, #tpu.memory_space<vmem>>, vector<8x32xf32>
    %c0_1 = arith.constant 0 : index
    %c0_2 = arith.constant 0 : index
    %1 = memref.load %arg3[%c0_1, %c0_2] : memref<1x1xf32, #tpu.memory_space<smem>>
    %c0_3 = arith.constant 0 : index
    %c0_4 = arith.constant 0 : index
    %2 = vector.load %arg2[%c0_3, %c0_4] : memref<32x1xf32, #tpu.memory_space<vmem>>, vector<32x1xf32>
    %cst = arith.constant dense<0.000000e+00> : vector<8x1xf32>
    %3 = tpu.matmul %0, %2, %cst {dimension_numbers = #tpu.dot_dimension_numbers<[1], [0], [0], [1], [0, 0, 1, 1], [], []>, precision = #tpu.contract_precision<fp32>} : vector<8x32xf32>, vector<32x1xf32>, vector<8x1xf32> -> vector<8x1xf32>
    %4 = vector.broadcast %1 : f32 to vector<8x1xf32>
    %5 = arith.addf %3, %4 : vector<8x1xf32>
    %6 = vector.shape_cast %5 : vector<8x1xf32> to vector<1x1x8xf32>
    %7 = arith.negf %6 : vector<1x1x8xf32>
    %8 = math.exp %7 : vector<1x1x8xf32>
    %cst_5 = arith.constant 1.000000e+00 : f32
    %9 = vector.broadcast %cst_5 : f32 to vector<1x1x8xf32>
    %10 = arith.addf %9, %8 : vector<1x1x8xf32>
    %11 = arith.divf %9, %10 : vector<1x1x8xf32>
    %c0_6 = arith.constant 0 : index
    %c0_7 = arith.constant 0 : index
    %c0_8 = arith.constant 0 : index
    %12 = vector.load %arg4[%c0_6, %c0_7, %c0_8] : memref<1x1x8xf32, #tpu.memory_space<vmem>>, vector<1x1x8xf32>
    tpu.vector_store %arg4[%c0_6, %c0_7, %c0_8], %11 {strides = array<i32>} : memref<1x1x8xf32, #tpu.memory_space<vmem>>, vector<1x1x8xf32>,
    return
  }
  func.func @transform_0(%arg0: i32) -> (i32, i32) {
    %c0_i32 = arith.constant 0 : i32
    %c0_i32_0 = arith.constant 0 : i32
    return %arg0, %c0_i32 : i32, i32
  }
  func.func @transform_1(%arg0: i32) -> (i32, i32) {
    %c0_i32 = arith.constant 0 : i32
    %c0_i32_0 = arith.constant 0 : i32
    %c0_i32_1 = arith.constant 0 : i32
    return %c0_i32, %c0_i32_0 : i32, i32
  }
  func.func @transform_2(%arg0: i32) -> (i32, i32) {
    %c0_i32 = arith.constant 0 : i32
    %c0_i32_0 = arith.constant 0 : i32
    %c0_i32_1 = arith.constant 0 : i32
    return %c0_i32, %c0_i32_0 : i32, i32
  }
  func.func @transform_3(%arg0: i32) -> (i32, i32, i32) {
    %c0_i32 = arith.constant 0 : i32
    %c0_i32_0 = arith.constant 0 : i32
    %c0_i32_1 = arith.constant 0 : i32
    return %arg0, %c0_i32, %c0_i32_0 : i32, i32, i32
  }
}

</mosaic_0001>

<llo_original>
// kernel: tpu_custom_call.1
$region0: #{tpu_custom_call.1}
  #allocation0 [shape = 'u32[]', space=smem, size = 0x4, offset = 0x4, fixed_abs, tag = 'smem constant byte address 0x4 - core index']
  #allocation1 [shape = 'u32[72,128]{1,0:T(1,128)}', space=vmem, size = 0x9000, scoped, tag = 'internal scratch']
  #allocation2 [shape = 'f32[1,1]{1,0:T(1,128)S(6)}', space=smem, size = 0x200, scoped, tag = 'scoped memory for tpu_custom_call.1']
  %s0 = inlined_call_operand.vmem [shape: f32[8,32], index: 0, kind: input, shape index: {}]
  %s1 = inlined_call_operand.vmem [shape: f32[32,1], index: 1, kind: input, shape index: {}]
  %s2 = inlined_call_operand.<no memory space> [shape: f32[1,1], index: 2, kind: input, shape index: {}]
  %s3 = inlined_call_operand.hbm [shape: f32[1,1,8], index: 3, kind: output, shape index: {}]
  %s4 = sld [smem:[#allocation0]]
  $region22: #{tpu_custom_call.1} parent=0
    _
  %s6 = ssub.s32 1, %s4
  %s7 = scalar_select 0, %s6, %s4
  %8 = sst [smem:[#allocation2]] %s2
  $region1: #{tpu_custom_call.1} parent=0
    #allocation3 [shape = 'u8[512]{0}', space=vmem, size = 0x400, scoped, tag = 'output window, operand 0, single buffered']
    #allocation4 [shape = 's32[1]{0}', space=sflag, size = 0x4, scoped, tag = 'scoped memory for tpu_custom_call.1']
    %9 = vsyncpa [#allocation4], 0
    // Predicated region
    $region2: #{tpu_custom_call.1} parent=1 // pred_check
      _
    $region3: #{tpu_custom_call.1} parent=1 // pred_check_branch
      %11 = sbr.rel (0) target = $region5
    $region4: #{tpu_custom_call.1} parent=1 // pred_region
      _
    $region5: #{tpu_custom_call.1} parent=1 // pred_fallthru
      _
    // Predicated region
    $region6: #{tpu_custom_call.1} parent=1 // pred_check
      _
    $region7: #{tpu_custom_call.1} parent=1 // pred_check_branch
      %13 = sbr.rel (0) target = $region9
    $region8: #{tpu_custom_call.1} parent=1 // pred_region
      _
    $region9: #{tpu_custom_call.1} parent=1 // pred_fallthru
      _
    // Predicated region
    $region10: #{tpu_custom_call.1} parent=1 // pred_check
      _
    $region11: #{tpu_custom_call.1} parent=1 // pred_check_branch
      %15 = sbr.rel (0) target = $region13
    $region12: #{tpu_custom_call.1} parent=1 // pred_region
      _
    $region13: #{tpu_custom_call.1} parent=1 // pred_fallthru
      _
    %v16 = vld [vmem:[%s0] sm:$0xff]
    %s17 = sld [smem:[#allocation2]]
    %v18 = vld [vmem:[%s1] sm:$0xff]
    %v19 = vld [vmem:[%s1 + $0x8] sm:$0xff]
    %v20 = vld [vmem:[%s1 + $0x10] sm:$0xff]
    %v21 = vld [vmem:[%s1 + $0x18] sm:$0xff]
    %v22 = vstv %s17
    %vm23 = vcmask 261120
    %v25 = vsel %vm23, %v16, 0
    %27 = vmatpush.msra.mxu0 0.0
    %28 = vmatpush.msra.mxu0 0.0
    %29 = vmatpush.msra.mxu0 0.0
    %30 = vmatpush.msra.mxu0 0.0
    %31 = vmatpush.msra.mxu0 0.0
    %32 = vmatpush.msra.mxu0 0.0
    %33 = vmatpush.msra.mxu0 0.0
    %34 = vmatpush.msra.mxu0 0.0
    %35 = vmatpush.msra.mxu0 0.0
    %36 = vmatpush.msra.mxu0 0.0
    %37 = vmatpush.msra.mxu0 0.0
    %38 = vmatpush.msra.mxu0 0.0
    %v39 = vand.u32 %v21, 4294901760
    %40 = vmatpush.msra.mxu0 %v39
    %v41 = vand.u32 %v20, 4294901760
    %42 = vmatpush.msra.mxu0 %v41
    %v43 = vand.u32 %v19, 4294901760
    %44 = vmatpush.msra.mxu0 %v43
    %v45 = vand.u32 %v18, 4294901760
    %46 = vmatpush.msra.mxu0 %v45
    %v47 = vand.u32 %v25, 4294901760
    %v48 = vsub.f32 %v25, %v47
    %v49 = vand.u32 %v48, 4294901760
    %v50 = vsub.f32 %v48, %v49
    %v51 = vand.u32 %v50, 4294901760
    %52 = vmatmul.f32.gmra.mxu0 %v51
    %v53 = vpop.f32.mrf.mxu0
    %v54 = vadd.f32 %v22, %v53
    %55 = vdwg.mxu0
    %56 = vmatpush.msra.mxu0 0.0
    %57 = vmatpush.msra.mxu0 0.0
    %58 = vmatpush.msra.mxu0 0.0
    %59 = vmatpush.msra.mxu0 0.0
    %60 = vmatpush.msra.mxu0 0.0
    %61 = vmatpush.msra.mxu0 0.0
    %62 = vmatpush.msra.mxu0 0.0
    %63 = vmatpush.msra.mxu0 0.0
    %64 = vmatpush.msra.mxu0 0.0
    %65 = vmatpush.msra.mxu0 0.0
    %66 = vmatpush.msra.mxu0 0.0
    %67 = vmatpush.msra.mxu0 0.0
    %v68 = vand.u32 %v21, 4294901760
    %v69 = vsub.f32 %v21, %v68
    %v70 = vand.u32 %v69, 4294901760
    %v71 = vsub.f32 %v69, %v70
    %v72 = vand.u32 %v71, 4294901760
    %73 = vmatpush.msra.mxu0 %v72
    %v74 = vand.u32 %v20, 4294901760
    %v75 = vsub.f32 %v20, %v74
    %v76 = vand.u32 %v75, 4294901760
    %v77 = vsub.f32 %v75, %v76
    %v78 = vand.u32 %v77, 4294901760
    %79 = vmatpush.msra.mxu0 %v78
    %v80 = vand.u32 %v19, 4294901760
    %v81 = vsub.f32 %v19, %v80
    %v82 = vand.u32 %v81, 4294901760
    %v83 = vsub.f32 %v81, %v82
    %v84 = vand.u32 %v83, 4294901760
    %85 = vmatpush.msra.mxu0 %v84
    %v86 = vand.u32 %v18, 4294901760
    %v87 = vsub.f32 %v18, %v86
    %v88 = vand.u32 %v87, 4294901760
    %v89 = vsub.f32 %v87, %v88
    %v90 = vand.u32 %v89, 4294901760
    %91 = vmatpush.msra.mxu0 %v90
    %v92 = vand.u32 %v25, 4294901760
    %93 = vmatmul.f32.gmra.mxu0 %v92
    %v94 = vpop.f32.mrf.mxu0
    %v95 = vadd.f32 %v54, %v94
    %96 = vdwg.mxu0
    %97 = vmatpush.msra.mxu0 0.0
    %98 = vmatpush.msra.mxu0 0.0
    %99 = vmatpush.msra.mxu0 0.0
    %100 = vmatpush.msra.mxu0 0.0
    %101 = vmatpush.msra.mxu0 0.0
    %102 = vmatpush.msra.mxu0 0.0
    %103 = vmatpush.msra.mxu0 0.0
    %104 = vmatpush.msra.mxu0 0.0
    %105 = vmatpush.msra.mxu0 0.0
    %106 = vmatpush.msra.mxu0 0.0
    %107 = vmatpush.msra.mxu0 0.0
    %108 = vmatpush.msra.mxu0 0.0
    %v109 = vand.u32 %v21, 4294901760
    %v110 = vsub.f32 %v21, %v109
    %111 = vmatpush.msra.mxu0 %v110
    %v112 = vand.u32 %v20, 4294901760
    %v113 = vsub.f32 %v20, %v112
    %114 = vmatpush.msra.mxu0 %v113
    %v115 = vand.u32 %v19, 4294901760
    %v116 = vsub.f32 %v19, %v115
    %117 = vmatpush.msra.mxu0 %v116
    %v118 = vand.u32 %v18, 4294901760
    %v119 = vsub.f32 %v18, %v118
    %120 = vmatpush.msra.mxu0 %v119
    %v121 = vand.u32 %v25, 4294901760
    %v122 = vsub.f32 %v25, %v121
    %123 = vmatmul.f32.gmra.mxu0 %v122
    %v124 = vpop.f32.mrf.mxu0
    %v125 = vadd.f32 %v95, %v124
    %126 = vdwg.mxu0
    %127 = vmatpush.msra.mxu0 0.0
    %128 = vmatpush.msra.mxu0 0.0
    %129 = vmatpush.msra.mxu0 0.0
    %130 = vmatpush.msra.mxu0 0.0
    %131 = vmatpush.msra.mxu0 0.0
    %132 = vmatpush.msra.mxu0 0.0
    %133 = vmatpush.msra.mxu0 0.0
    %134 = vmatpush.msra.mxu0 0.0
    %135 = vmatpush.msra.mxu0 0.0
    %136 = vmatpush.msra.mxu0 0.0
    %137 = vmatpush.msra.mxu0 0.0
    %138 = vmatpush.msra.mxu0 0.0
    %v139 = vand.u32 %v21, 4294901760
    %140 = vmatpush.msra.mxu0 %v139
    %v141 = vand.u32 %v20, 4294901760
    %142 = vmatpush.msra.mxu0 %v141
    %v143 = vand.u32 %v19, 4294901760
    %144 = vmatpush.msra.mxu0 %v143
    %v145 = vand.u32 %v18, 4294901760
    %146 = vmatpush.msra.mxu0 %v145
    %v147 = vand.u32 %v25, 4294901760
    %v148 = vsub.f32 %v25, %v147
    %v149 = vand.u32 %v148, 4294901760
    %150 = vmatmul.f32.gmra.mxu0 %v149
    %v151 = vpop.f32.mrf.mxu0
    %v152 = vadd.f32 %v125, %v151
    %153 = vdwg.mxu0
    %154 = vmatpush.msra.mxu0 0.0
    %155 = vmatpush.msra.mxu0 0.0
    %156 = vmatpush.msra.mxu0 0.0
    %157 = vmatpush.msra.mxu0 0.0
    %158 = vmatpush.msra.mxu0 0.0
    %159 = vmatpush.msra.mxu0 0.0
    %160 = vmatpush.msra.mxu0 0.0
    %161 = vmatpush.msra.mxu0 0.0
    %162 = vmatpush.msra.mxu0 0.0
    %163 = vmatpush.msra.mxu0 0.0
    %164 = vmatpush.msra.mxu0 0.0
    %165 = vmatpush.msra.mxu0 0.0
    %v166 = vand.u32 %v21, 4294901760
    %v167 = vsub.f32 %v21, %v166
    %v168 = vand.u32 %v167, 4294901760
    %169 = vmatpush.msra.mxu0 %v168
    %v170 = vand.u32 %v20, 4294901760
    %v171 = vsub.f32 %v20, %v170
    %v172 = vand.u32 %v171, 4294901760
    %173 = vmatpush.msra.mxu0 %v172
    %v174 = vand.u32 %v19, 4294901760
    %v175 = vsub.f32 %v19, %v174
    %v176 = vand.u32 %v175, 4294901760
    %177 = vmatpush.msra.mxu0 %v176
    %v178 = vand.u32 %v18, 4294901760
    %v179 = vsub.f32 %v18, %v178
    %v180 = vand.u32 %v179, 4294901760
    %181 = vmatpush.msra.mxu0 %v180
    %v182 = vand.u32 %v25, 4294901760
    %183 = vmatmul.f32.gmra.mxu0 %v182
    %v184 = vpop.f32.mrf.mxu0
    %v185 = vadd.f32 %v152, %v184
    %186 = vdwg.mxu0
    %187 = vmatpush.msra.mxu0 0.0
    %188 = vmatpush.msra.mxu0 0.0
    %189 = vmatpush.msra.mxu0 0.0
    %190 = vmatpush.msra.mxu0 0.0
    %191 = vmatpush.msra.mxu0 0.0
    %192 = vmatpush.msra.mxu0 0.0
    %193 = vmatpush.msra.mxu0 0.0
    %194 = vmatpush.msra.mxu0 0.0
    %195 = vmatpush.msra.mxu0 0.0
    %196 = vmatpush.msra.mxu0 0.0
    %197 = vmatpush.msra.mxu0 0.0
    %198 = vmatpush.msra.mxu0 0.0
    %v199 = vand.u32 %v21, 4294901760
    %200 = vmatpush.msra.mxu0 %v199
    %v201 = vand.u32 %v20, 4294901760
    %202 = vmatpush.msra.mxu0 %v201
    %v203 = vand.u32 %v19, 4294901760
    %204 = vmatpush.msra.mxu0 %v203
    %v205 = vand.u32 %v18, 4294901760
    %206 = vmatpush.msra.mxu0 %v205
    %v207 = vand.u32 %v25, 4294901760
    %208 = vmatmul.f32.gmra.mxu0 %v207
    %v209 = vpop.f32.mrf.mxu0
    %v210 = vadd.f32 %v185, %v209
    %211 = vdwg.mxu0
    %v212 = vxor.u32 %v210, 2147483648
    %v213 = vmul.f32 %v212, 1.442695
    %v214 = vpow.pop %v213
    %v215 = vadd.f32 %v214, 1.0
    %v216 = vrcp.pop %v215
    %v217 = vmul.f32 %v215, %v216
    %v218 = vsub.f32 1.0, %v217
    %v219 = vmul.f32 %v216, %v218
    %v220 = vadd.f32 %v216, %v219
    %vm221 = vweird.f32 %v215
    %vm222 = vweird.f32 %v216
    %vm223 = vmor %vm221, %vm222
    %v224 = vsel %vm223, %v216, %v220
    %v225 = vand.u32 2147483647, %v215
    %vm226 = vcmp.eq.f32.partialorder %v225, 8.507059e+37
    %v227 = vand.u32 %v215, 2147483648
    %v228 = vor.u32 1.1754944e-38, %v227
    %v229 = vsel %vm226, %v228, %v224
    %v230 = vmul.f32 1.0, %v229
    %232 = vset.pattern.permute.xlu0 0
    %233 = vperm.xlu0 %232, %v230
    %v234 = vpop.permute.xlu0 %233
    %v235 = vlaneseq
    %v236 = vand.u32 %v235, 127
    %v237 = vperm.slane %v234, %v236
    %vm239 = vcmask 57344
    %240 = vst.msk [vmem:[#allocation3] sm:$0x1] %vm239, %v237
    // Predicated region
    $region14: #{tpu_custom_call.1} parent=1 // pred_check
      _
    $region15: #{tpu_custom_call.1} parent=1 // pred_check_branch
      %242 = sbr.rel (0) target = $region17
    $region16: #{tpu_custom_call.1} parent=1 // pred_region
      %244 = vsyncadd [#allocation4], 0
      %s246 = sshll.u32 [#allocation3], 4
      %s247 = int_to_ptr.vmem [resolvable:$true] %s246
      %s248 = sshll.u32 %s3, 4
      %s249 = int_to_ptr.hbm [resolvable:$true] %s248
      %251 = dma.vmem_to_hbm [thread:$0]  %s247, 16, %s249, [#allocation4]
    $region17: #{tpu_custom_call.1} parent=1 // pred_fallthru
      _
    // Predicated region
    $region18: #{tpu_custom_call.1} parent=1 // pred_check
      _
    $region19: #{tpu_custom_call.1} parent=1 // pred_check_branch
      %253 = sbr.rel (0) target = $region21
    $region20: #{tpu_custom_call.1} parent=1 // pred_region
      %255 = dma.done [#allocation4], 16
    $region21: #{tpu_custom_call.1} parent=1 // pred_fallthru
      _
    %256 = vsyncpa [#allocation4], 1

</llo_original>
